<compile_context>
chip_gen: v7x
topology: tpu7x:2x2x1
jax: 0.10.0
libtpu: 0.0.40
codegen_flags: <defaults>
</compile_context>

<pallas_src>
import functools

import numpy as np
import jax
import jax.numpy as jnp
from jax.experimental import pallas as pl
from jax.experimental.pallas import tpu as pltpu

EPS = 1e-5  # torch.nn.BatchNorm1d default eps


def deepfm_kernel(lin_ref, emb_ref, w1_ref, b1_ref, w2_ref, b2_ref, w3_ref,
                  bias_ref, out_ref, *, num_fields, dim):
    # Inputs are laid out feature-major / batch-on-lanes:
    #   lin_ref : (F,   TB) bf16   gathered per-field linear weights
    #   emb_ref : (F*D, TB) bf16   gathered embeddings, row f*D+d == field f, dim d
    #   w1_ref  : (H1, F*D) f32    BN-folded, transposed
    #   b1_ref  : (H1, 1)   f32
    #   w2_ref  : (H2, H1)  f32    BN-folded, transposed
    #   b2_ref  : (H2, 1)   f32
    #   w3_ref  : (H2, 1)   f32
    #   bias_ref: (1, 1)    f32    FeaturesLinear bias + final MLP bias
    #   out_ref : (1, 1, TB) f32
    e = emb_ref[...].astype(jnp.float32)                        # (F*D, TB)
    lin_w = lin_ref[...].astype(jnp.float32)                    # (F,   TB)

    # ---- FeaturesLinear: sum of gathered per-field weights -> (1, TB)
    lin = jnp.sum(lin_w, axis=0, keepdims=True)

    # ---- FactorizationMachine (reduce_sum=True) from the flat layout -> (1, TB)
    sum_f = e[0:dim, :]
    for f in range(1, num_fields):                               # static, tiny F
        sum_f = sum_f + e[f * dim:(f + 1) * dim, :]              # (D, TB)
    square_of_sum = jnp.sum(sum_f * sum_f, axis=0, keepdims=True)
    sum_of_square = jnp.sum(e * e, axis=0, keepdims=True)
    fm = 0.5 * (square_of_sum - sum_of_square)                   # (1, TB)

    # ---- MLP: [Linear(+folded BN) -> ReLU -> Dropout(id)] x2 -> Linear(1)
    h = jnp.dot(w1_ref[...], e, preferred_element_type=jnp.float32) + b1_ref[...]
    h = jnp.maximum(h, 0.0)                                      # (H1, TB)
    h = jnp.dot(w2_ref[...], h, preferred_element_type=jnp.float32) + b2_ref[...]
    h = jnp.maximum(h, 0.0)                                      # (H2, TB)
    # final Linear(H2, 1): VPU multiply + sublane reduce (no N=1 MXU pass)
    mlp = jnp.sum(h * w3_ref[...], axis=0, keepdims=True)        # (1, TB)

    out_ref[...] = (lin + fm + mlp + bias_ref[...])[None]        # (1, 1, TB)


def _round_up(x, m):
    return (x + m - 1) // m * m


def _choose_tile(b):
    # Lane-dense batch tiles (multiple of 128), big enough to amortize the
    # ~0.35us per-grid-step overhead; tiny VMEM footprint in this layout.
    for tb in (4096, 2048, 1024, 512, 256, 128):
        if b >= tb:
            return tb
    return 128


def deepfm_forward(x_idx, params):
    """x_idx: (B, F) int32 per-field indices.  Returns (B,) float32 logits."""
    B, F = x_idx.shape
    D = params["emb_table"].shape[1]
    H1 = params["w1"].shape[1]
    H2 = params["w2"].shape[1]

    TB = _choose_tile(B)
    B_pad = _round_up(B, TB)
    grid_b = B_pad // TB

    # ---- glue: gather + transpose to lane-dense (feature, batch) layout ----
    idx = x_idx.astype(jnp.int32) + params["offsets"][None, :]        # (B, F)
    idx = jnp.pad(idx, ((0, B_pad - B), (0, 0)))                      # pad rows -> index 0
    emb = params["emb_table"][idx]                                    # (B_pad, F, D) bf16
    embT = jnp.transpose(emb, (1, 2, 0)).reshape(F * D, B_pad)        # (F*D, B_pad)
    linT = params["lin_table"][idx][..., 0].T                         # (F, B_pad)  bf16

    # ---- fold eval-mode BatchNorm into the Linear weights (host side) ----
    s1 = params["g1"] * jax.lax.rsqrt(params["rv1"] + EPS)            # (H1,)
    w1t = (params["w1"] * s1[None, :]).T                              # (H1, F*D)
    b1c = ((params["b1"] - params["rm1"]) * s1 + params["be1"]).reshape(H1, 1)
    s2 = params["g2"] * jax.lax.rsqrt(params["rv2"] + EPS)            # (H2,)
    w2t = (params["w2"] * s2[None, :]).T                              # (H2, H1)
    b2c = ((params["b2"] - params["rm2"]) * s2 + params["be2"]).reshape(H2, 1)
    w3c = params["w3"].reshape(H2, 1)                                 # (H2, 1)
    # FeaturesLinear bias + final MLP bias folded into one in-kernel scalar.
    bias = (params["lin_bias"] + params["b3"]).reshape(1, 1)          # (1, 1)

    kernel = functools.partial(deepfm_kernel, num_fields=F, dim=D)
    resident = lambda shape: pl.BlockSpec(shape, lambda i: (0, 0))    # stays in VMEM

    out = pl.pallas_call(
        kernel,
        grid=(grid_b,),
        in_specs=[
            pl.BlockSpec((F, TB), lambda i: (0, i)),                  # linT  (streamed)
            pl.BlockSpec((F * D, TB), lambda i: (0, i)),              # embT  (streamed)
            resident((H1, F * D)),                                    # w1t
            resident((H1, 1)),                                        # b1
            resident((H2, H1)),                                       # w2t
            resident((H2, 1)),                                        # b2
            resident((H2, 1)),                                        # w3
            resident((1, 1)),                                         # scalar bias
        ],
        out_specs=pl.BlockSpec((1, 1, TB), lambda i: (i, 0, 0)),      # lane-dense out
        out_shape=jax.ShapeDtypeStruct((grid_b, 1, TB), jnp.float32),
        compiler_params=pltpu.CompilerParams(
            dimension_semantics=("parallel",),
            vmem_limit_bytes=32 * 1024 * 1024),
    )(linT, embT, w1t, b1c, w2t, b2c, w3c, bias)

    return out.reshape(-1)[:B]


def init_params(key, field_dims, dim, mlp_dims=(16, 16)):
    field_dims = np.asarray(field_dims, dtype=np.int64)
    vocab = int(field_dims.sum())
    num_fields = len(field_dims)
    embed_out = num_fields * dim
    h1, h2 = mlp_dims
    ks = jax.random.split(key, 16)

    p = {}
    p["offsets"] = jnp.asarray(
        np.concatenate(([0], np.cumsum(field_dims)[:-1])), jnp.int32)
    # Tables stored in bfloat16 (inference optimization: halves HBM traffic on
    # the dominant embedding stream); all math runs in f32 inside the kernel.
    p["emb_table"] = (0.1 * jax.random.normal(ks[0], (vocab, dim))).astype(jnp.bfloat16)
    p["lin_table"] = (0.1 * jax.random.normal(ks[1], (vocab, 1))).astype(jnp.bfloat16)
    p["lin_bias"] = jnp.asarray([0.05], jnp.float32)

    # MLP: Linear(F*D,16) BN ReLU Drop; Linear(16,16) BN ReLU Drop; Linear(16,1)
    p["w1"] = 0.1 * jax.random.normal(ks[2], (embed_out, h1), jnp.float32)
    p["b1"] = 0.1 * jax.random.normal(ks[3], (h1,), jnp.float32)
    p["g1"] = 1.0 + 0.1 * jax.random.normal(ks[4], (h1,), jnp.float32)
    p["be1"] = 0.1 * jax.random.normal(ks[5], (h1,), jnp.float32)
    p["rm1"] = 0.1 * jax.random.normal(ks[6], (h1,), jnp.float32)
    p["rv1"] = jax.random.uniform(ks[7], (h1,), jnp.float32, 0.5, 1.5)

    p["w2"] = 0.1 * jax.random.normal(ks[8], (h1, h2), jnp.float32)
    p["b2"] = 0.1 * jax.random.normal(ks[9], (h2,), jnp.float32)
    p["g2"] = 1.0 + 0.1 * jax.random.normal(ks[10], (h2,), jnp.float32)
    p["be2"] = 0.1 * jax.random.normal(ks[11], (h2,), jnp.float32)
    p["rm2"] = 0.1 * jax.random.normal(ks[12], (h2,), jnp.float32)
    p["rv2"] = jax.random.uniform(ks[13], (h2,), jnp.float32, 0.5, 1.5)

    p["w3"] = 0.1 * jax.random.normal(ks[14], (h2, 1), jnp.float32)
    p["b3"] = jnp.asarray([-0.02], jnp.float32)
    return p


def deepfm_reference(x_idx, params):
    """Pure-JAX mirror of the PyTorch module (eval mode) for correctness."""
    idx = x_idx.astype(jnp.int32) + params["offsets"][None, :]
    emb = params["emb_table"][idx].astype(jnp.float32)                # (B, F, D)
    lin_w = params["lin_table"][idx][..., 0].astype(jnp.float32)      # (B, F)
    B, F, D = emb.shape

    linear = jnp.sum(lin_w, axis=1, keepdims=True) + params["lin_bias"][None, :]
    sum_f = jnp.sum(emb, axis=1)
    fm = 0.5 * jnp.sum(sum_f * sum_f - jnp.sum(emb * emb, axis=1),
                       axis=1, keepdims=True)

    h = emb.reshape(B, F * D) @ params["w1"] + params["b1"][None, :]
    h = params["g1"] * (h - params["rm1"]) / jnp.sqrt(params["rv1"] + EPS) + params["be1"]
    h = jnp.maximum(h, 0.0)
    h = h @ params["w2"] + params["b2"][None, :]
    h = params["g2"] * (h - params["rm2"]) / jnp.sqrt(params["rv2"] + EPS) + params["be2"]
    h = jnp.maximum(h, 0.0)
    mlp = h @ params["w3"] + params["b3"][None, :]
    return (linear + fm + mlp)[:, 0]


if __name__ == "__main__":
    # Small config consistent with the module: opt.field_dims, opt.dim
    field_dims = (8, 6, 10, 4)   # num_fields = 4
    dim = 8                      # embedding dim
    batch = 2

    key = jax.random.PRNGKey(0)
    k_params, k_idx = jax.random.split(key)
    params = init_params(k_params, field_dims, dim)

    def sample_x(k, b):
        cols = [jax.random.randint(jax.random.fold_in(k, f), (b,), 0, fd, dtype=jnp.int32)
                for f, fd in enumerate(field_dims)]
        return jnp.stack(cols, axis=1)

    x = sample_x(k_idx, batch)                       # (2, 4) int32 field indices
    fwd = jax.jit(deepfm_forward)

    y = jax.block_until_ready(fwd(x, params))
    y_ref = jax.block_until_ready(deepfm_reference(x, params))
    assert y.shape == (batch,), y.shape
    assert np.allclose(np.asarray(y), np.asarray(y_ref), atol=1e-4, rtol=1e-4), (y, y_ref)

    # Also exercise a multi-step grid (batch padding + pipelined streaming).
    x_big = sample_x(jax.random.fold_in(k_idx, 99), 300)
    y_big = jax.block_until_ready(fwd(x_big, params))
    y_big_ref = jax.block_until_ready(deepfm_reference(x_big, params))
    assert y_big.shape == (300,), y_big.shape
    assert np.allclose(np.asarray(y_big), np.asarray(y_big_ref), atol=1e-4, rtol=1e-4)

    print("KERNEL_OK")
</pallas_src>

<mosaic_0001>
module attributes {stable_mosaic.version = 11 : i64} {
  func.func @deepfm_kernel(%arg0: i32, %arg1: memref<4x128xbf16, #tpu.memory_space<vmem>>, %arg2: memref<32x128xbf16, #tpu.memory_space<vmem>>, %arg3: memref<16x32xf32, #tpu.memory_space<vmem>>, %arg4: memref<16x1xf32, #tpu.memory_space<vmem>>, %arg5: memref<16x16xf32, #tpu.memory_space<vmem>>, %arg6: memref<16x1xf32, #tpu.memory_space<vmem>>, %arg7: memref<16x1xf32, #tpu.memory_space<vmem>>, %arg8: memref<1x1xf32, #tpu.memory_space<vmem>>, %arg9: memref<1x1x128xf32, #tpu.memory_space<vmem>>) attributes {dimension_semantics = [#tpu.dimension_semantics<parallel>], iteration_bounds = array<i64: 1>, scalar_prefetch = 0 : i64, scratch_operands = 0 : i64, tpu.core_type = #tpu.core_type<tc>, window_params = [{transform_indices = @transform_0, window_bounds = array<i64: 4, 128>}, {transform_indices = @transform_1, window_bounds = array<i64: 32, 128>}, {pipeline_mode = #tpu.pipeline_mode<synchronous>, transform_indices = @transform_2, window_bounds = array<i64: 16, 32>}, {pipeline_mode = #tpu.pipeline_mode<synchronous>, transform_indices = @transform_3, window_bounds = array<i64: 16, 1>}, {pipeline_mode = #tpu.pipeline_mode<synchronous>, transform_indices = @transform_4, window_bounds = array<i64: 16, 16>}, {pipeline_mode = #tpu.pipeline_mode<synchronous>, transform_indices = @transform_5, window_bounds = array<i64: 16, 1>}, {pipeline_mode = #tpu.pipeline_mode<synchronous>, transform_indices = @transform_6, window_bounds = array<i64: 16, 1>}, {pipeline_mode = #tpu.pipeline_mode<synchronous>, transform_indices = @transform_7, window_bounds = array<i64: 1, 1>}, {transform_indices = @transform_8, window_bounds = array<i64: 1, 1, 128>}]} {
    %c0 = arith.constant 0 : index
    %c0_0 = arith.constant 0 : index
    %0 = vector.load %arg2[%c0, %c0_0] : memref<32x128xbf16, #tpu.memory_space<vmem>>, vector<32x128xbf16>
    %1 = arith.extf %0 : vector<32x128xbf16> to vector<32x128xf32>
    %c0_1 = arith.constant 0 : index
    %c0_2 = arith.constant 0 : index
    %2 = vector.load %arg1[%c0_1, %c0_2] : memref<4x128xbf16, #tpu.memory_space<vmem>>, vector<4x128xbf16>
    %3 = arith.extf %2 : vector<4x128xbf16> to vector<4x128xf32>
    %cst = arith.constant dense<0.000000e+00> : vector<128xf32>
    %4 = vector.multi_reduction <add>, %3, %cst [0] : vector<4x128xf32> to vector<128xf32>
    %5 = vector.shape_cast %4 : vector<128xf32> to vector<1x128xf32>
    %6 = vector.extract_strided_slice %1 {offsets = [0, 0], sizes = [8, 128], strides = [1, 1]} : vector<32x128xf32> to vector<8x128xf32>
    %7 = vector.extract_strided_slice %1 {offsets = [8, 0], sizes = [8, 128], strides = [1, 1]} : vector<32x128xf32> to vector<8x128xf32>
    %8 = arith.addf %6, %7 : vector<8x128xf32>
    %9 = vector.extract_strided_slice %1 {offsets = [16, 0], sizes = [8, 128], strides = [1, 1]} : vector<32x128xf32> to vector<8x128xf32>
    %10 = arith.addf %8, %9 : vector<8x128xf32>
    %11 = vector.extract_strided_slice %1 {offsets = [24, 0], sizes = [8, 128], strides = [1, 1]} : vector<32x128xf32> to vector<8x128xf32>
    %12 = arith.addf %10, %11 : vector<8x128xf32>
    %13 = arith.mulf %12, %12 : vector<8x128xf32>
    %cst_3 = arith.constant dense<0.000000e+00> : vector<128xf32>
    %14 = vector.multi_reduction <add>, %13, %cst_3 [0] : vector<8x128xf32> to vector<128xf32>
    %15 = vector.shape_cast %14 : vector<128xf32> to vector<1x128xf32>
    %16 = arith.mulf %1, %1 : vector<32x128xf32>
    %cst_4 = arith.constant dense<0.000000e+00> : vector<128xf32>
    %17 = vector.multi_reduction <add>, %16, %cst_4 [0] : vector<32x128xf32> to vector<128xf32>
    %18 = vector.shape_cast %17 : vector<128xf32> to vector<1x128xf32>
    %19 = arith.subf %15, %18 : vector<1x128xf32>
    %cst_5 = arith.constant 5.000000e-01 : f32
    %20 = vector.broadcast %cst_5 : f32 to vector<1x128xf32>
    %21 = arith.mulf %20, %19 : vector<1x128xf32>
    %c0_6 = arith.constant 0 : index
    %c0_7 = arith.constant 0 : index
    %22 = vector.load %arg3[%c0_6, %c0_7] : memref<16x32xf32, #tpu.memory_space<vmem>>, vector<16x32xf32>
    %cst_8 = arith.constant dense<0.000000e+00> : vector<16x128xf32>
    %23 = tpu.matmul %22, %1, %cst_8 {dimension_numbers = #tpu.dot_dimension_numbers<[1], [0], [0], [1], [0, 0, 1, 1], [], []>} : vector<16x32xf32>, vector<32x128xf32>, vector<16x128xf32> -> vector<16x128xf32>
    %c0_9 = arith.constant 0 : index
    %c0_10 = arith.constant 0 : index
    %24 = vector.load %arg4[%c0_9, %c0_10] : memref<16x1xf32, #tpu.memory_space<vmem>>, vector<16x1xf32>
    %25 = vector.broadcast %24 : vector<16x1xf32> to vector<16x128xf32>
    %26 = arith.addf %23, %25 : vector<16x128xf32>
    %cst_11 = arith.constant 0.000000e+00 : f32
    %27 = vector.broadcast %cst_11 : f32 to vector<16x128xf32>
    %28 = arith.maximumf %26, %27 : vector<16x128xf32>
    %c0_12 = arith.constant 0 : index
    %c0_13 = arith.constant 0 : index
    %29 = vector.load %arg5[%c0_12, %c0_13] : memref<16x16xf32, #tpu.memory_space<vmem>>, vector<16x16xf32>
    %cst_14 = arith.constant dense<0.000000e+00> : vector<16x128xf32>
    %30 = tpu.matmul %29, %28, %cst_14 {dimension_numbers = #tpu.dot_dimension_numbers<[1], [0], [0], [1], [0, 0, 1, 1], [], []>} : vector<16x16xf32>, vector<16x128xf32>, vector<16x128xf32> -> vector<16x128xf32>
    %c0_15 = arith.constant 0 : index
    %c0_16 = arith.constant 0 : index
    %31 = vector.load %arg6[%c0_15, %c0_16] : memref<16x1xf32, #tpu.memory_space<vmem>>, vector<16x1xf32>
    %32 = vector.broadcast %31 : vector<16x1xf32> to vector<16x128xf32>
    %33 = arith.addf %30, %32 : vector<16x128xf32>
    %cst_17 = arith.constant 0.000000e+00 : f32
    %34 = vector.broadcast %cst_17 : f32 to vector<16x128xf32>
    %35 = arith.maximumf %33, %34 : vector<16x128xf32>
    %c0_18 = arith.constant 0 : index
    %c0_19 = arith.constant 0 : index
    %36 = vector.load %arg7[%c0_18, %c0_19] : memref<16x1xf32, #tpu.memory_space<vmem>>, vector<16x1xf32>
    %37 = vector.broadcast %36 : vector<16x1xf32> to vector<16x128xf32>
    %38 = arith.mulf %35, %37 : vector<16x128xf32>
    %cst_20 = arith.constant dense<0.000000e+00> : vector<128xf32>
    %39 = vector.multi_reduction <add>, %38, %cst_20 [0] : vector<16x128xf32> to vector<128xf32>
    %40 = vector.shape_cast %39 : vector<128xf32> to vector<1x128xf32>
    %41 = arith.addf %5, %21 : vector<1x128xf32>
    %42 = arith.addf %41, %40 : vector<1x128xf32>
    %c0_21 = arith.constant 0 : index
    %c0_22 = arith.constant 0 : index
    %43 = vector.load %arg8[%c0_21, %c0_22] : memref<1x1xf32, #tpu.memory_space<vmem>>, vector<1x1xf32>
    %44 = vector.broadcast %43 : vector<1x1xf32> to vector<1x128xf32>
    %45 = arith.addf %42, %44 : vector<1x128xf32>
    %46 = vector.shape_cast %45 : vector<1x128xf32> to vector<1x1x128xf32>
    %c0_23 = arith.constant 0 : index
    %c0_24 = arith.constant 0 : index
    %c0_25 = arith.constant 0 : index
    %47 = vector.load %arg9[%c0_23, %c0_24, %c0_25] : memref<1x1x128xf32, #tpu.memory_space<vmem>>, vector<1x1x128xf32>
    tpu.vector_store %arg9[%c0_23, %c0_24, %c0_25], %46 {strides = array<i32>} : memref<1x1x128xf32, #tpu.memory_space<vmem>>, vector<1x1x128xf32>,
    return
  }
  func.func @transform_0(%arg0: i32) -> (i32, i32) {
    %c0_i32 = arith.constant 0 : i32
    %c0_i32_0 = arith.constant 0 : i32
    return %c0_i32, %arg0 : i32, i32
  }
  func.func @transform_1(%arg0: i32) -> (i32, i32) {
    %c0_i32 = arith.constant 0 : i32
    %c0_i32_0 = arith.constant 0 : i32
    return %c0_i32, %arg0 : i32, i32
  }
  func.func @transform_2(%arg0: i32) -> (i32, i32) {
    %c0_i32 = arith.constant 0 : i32
    %c0_i32_0 = arith.constant 0 : i32
    %c0_i32_1 = arith.constant 0 : i32
    return %c0_i32, %c0_i32_0 : i32, i32
  }
  func.func @transform_3(%arg0: i32) -> (i32, i32) {
    %c0_i32 = arith.constant 0 : i32
    %c0_i32_0 = arith.constant 0 : i32
    %c0_i32_1 = arith.constant 0 : i32
    return %c0_i32, %c0_i32_0 : i32, i32
  }
  func.func @transform_4(%arg0: i32) -> (i32, i32) {
    %c0_i32 = arith.constant 0 : i32
    %c0_i32_0 = arith.constant 0 : i32
    %c0_i32_1 = arith.constant 0 : i32
    return %c0_i32, %c0_i32_0 : i32, i32
  }
  func.func @transform_5(%arg0: i32) -> (i32, i32) {
    %c0_i32 = arith.constant 0 : i32
    %c0_i32_0 = arith.constant 0 : i32
    %c0_i32_1 = arith.constant 0 : i32
    return %c0_i32, %c0_i32_0 : i32, i32
  }
  func.func @transform_6(%arg0: i32) -> (i32, i32) {
    %c0_i32 = arith.constant 0 : i32
    %c0_i32_0 = arith.constant 0 : i32
    %c0_i32_1 = arith.constant 0 : i32
    return %c0_i32, %c0_i32_0 : i32, i32
  }
  func.func @transform_7(%arg0: i32) -> (i32, i32) {
    %c0_i32 = arith.constant 0 : i32
    %c0_i32_0 = arith.constant 0 : i32
    %c0_i32_1 = arith.constant 0 : i32
    return %c0_i32, %c0_i32_0 : i32, i32
  }
  func.func @transform_8(%arg0: i32) -> (i32, i32, i32) {
    %c0_i32 = arith.constant 0 : i32
    %c0_i32_0 = arith.constant 0 : i32
    %c0_i32_1 = arith.constant 0 : i32
    return %arg0, %c0_i32, %c0_i32_0 : i32, i32, i32
  }
}

</mosaic_0001>

<llo_original>
// kernel: squeeze.1
$region0: #{squeeze.1}
  %s0 = inlined_call_operand.vmem [shape: bf16[512], index: 0, kind: input, shape index: {}]
  %s1 = inlined_call_operand.vmem [shape: bf16[128,4], index: 1, kind: output, shape index: {}]
  $region1: #{squeeze.1} parent=0
    #allocation0 [shape = 'u8[65536]{0}', space=vmem, size = 0x10000, scoped, tag = 'scoped mem for output reshape']
    #allocation1 [shape = 'u8[4096]{0}', space=vmem, size = 0x1000, scoped, tag = 'scoped mem for input reshape']
    %s3 = smul.u32 2, 2
    %s4 = sshllo.u32 0, %s3
    %s5 = sshrl.u32 %s4, 1
    %s6 = sor.u32 %s4, %s5
    %s7 = sand.u32 %s6, 85
    %s8 = sshrl.u32 %s7, 1
    %s9 = sor.u32 %s7, %s8
    %s10 = sand.u32 51, %s9
    %s11 = sshrl.u32 %s10, 2
    %s12 = sor.u32 %s10, %s11
    %s13 = sand.u32 15, %s12
    %v14 = vld [vmem:[%s0] sm:%s13]
    %v15 = vunpack.c.l.bf16 %v14
    %v16 = vunpack.c.h.bf16 %v14
    %17 = vst [vmem:[#allocation1] sm:%s4] %v15
    %v18 = vld [vmem:[#allocation1] sm:$0xf]
    %vm19 = vcmask 31744
    %20 = vst.msk [vmem:[#allocation0] sm:$0x1] %vm19, %v18
    %s21 = scalar_lea.vmem [#allocation0], 31
    %22 = vst.msk [vmem:[%s21] sm:$0x2] %vm19, %v18
    %s23 = scalar_lea.vmem [#allocation0], 62
    %24 = vst.msk [vmem:[%s23] sm:$0x4] %vm19, %v18
    %s25 = scalar_lea.vmem [#allocation0], 93
    %26 = vst.msk [vmem:[%s25] sm:$0x8] %vm19, %v18
    %v27 = vld [vmem:[#allocation1] sm:$0xf]
    %28 = vrot.lane.b32.xlu0 %v27, 124
    %v29 = vpop.permute.xlu0 %28
    %vm30 = vcmask 31744
    %s31 = scalar_lea.vmem [#allocation0], 1
    %32 = vst.msk [vmem:[%s31] sm:$0x1] %vm30, %v29
    %s33 = scalar_lea.vmem [#allocation0], 32
    %34 = vst.msk [vmem:[%s33] sm:$0x2] %vm30, %v29
    %s35 = scalar_lea.vmem [#allocation0], 63
    %36 = vst.msk [vmem:[%s35] sm:$0x4] %vm30, %v29
    %s37 = scalar_lea.vmem [#allocation0], 94
    %38 = vst.msk [vmem:[%s37] sm:$0x8] %vm30, %v29
    %v39 = vld [vmem:[#allocation1] sm:$0xf]
    %40 = vrot.lane.b32.xlu0 %v39, 120
    %v41 = vpop.permute.xlu0 %40
    %vm42 = vcmask 31744
    %s43 = scalar_lea.vmem [#allocation0], 2
    %44 = vst.msk [vmem:[%s43] sm:$0x1] %vm42, %v41
    %s45 = scalar_lea.vmem [#allocation0], 33
    %46 = vst.msk [vmem:[%s45] sm:$0x2] %vm42, %v41
    %s47 = scalar_lea.vmem [#allocation0], 64
    %48 = vst.msk [vmem:[%s47] sm:$0x4] %vm42, %v41
    %s49 = scalar_lea.vmem [#allocation0], 95
    %50 = vst.msk [vmem:[%s49] sm:$0x8] %vm42, %v41
    %v51 = vld [vmem:[#allocation1] sm:$0xf]
    %52 = vrot.lane.b32.xlu0 %v51, 116
    %v53 = vpop.permute.xlu0 %52
    %vm54 = vcmask 31744
    %s55 = scalar_lea.vmem [#allocation0], 3
    %56 = vst.msk [vmem:[%s55] sm:$0x1] %vm54, %v53
    %s57 = scalar_lea.vmem [#allocation0], 34
    %58 = vst.msk [vmem:[%s57] sm:$0x2] %vm54, %v53
    %s59 = scalar_lea.vmem [#allocation0], 65
    %60 = vst.msk [vmem:[%s59] sm:$0x4] %vm54, %v53
    %s61 = scalar_lea.vmem [#allocation0], 96
    %62 = vst.msk [vmem:[%s61] sm:$0x8] %vm54, %v53
    %v63 = vld [vmem:[#allocation1] sm:$0xf]
    %64 = vrot.lane.b32.xlu0 %v63, 112
    %v65 = vpop.permute.xlu0 %64
    %vm66 = vcmask 31744
    %s67 = scalar_lea.vmem [#allocation0], 4
    %68 = vst.msk [vmem:[%s67] sm:$0x1] %vm66, %v65
    %s69 = scalar_lea.vmem [#allocation0], 35
    %70 = vst.msk [vmem:[%s69] sm:$0x2] %vm66, %v65
    %s71 = scalar_lea.vmem [#allocation0], 66
    %72 = vst.msk [vmem:[%s71] sm:$0x4] %vm66, %v65
    %s73 = scalar_lea.vmem [#allocation0], 97
    %74 = vst.msk [vmem:[%s73] sm:$0x8] %vm66, %v65
    %v75 = vld [vmem:[#allocation1] sm:$0xf]
    %76 = vrot.lane.b32.xlu0 %v75, 108
    %v77 = vpop.permute.xlu0 %76
    %vm78 = vcmask 31744
    %s79 = scalar_lea.vmem [#allocation0], 5
    %80 = vst.msk [vmem:[%s79] sm:$0x1] %vm78, %v77
    %s81 = scalar_lea.vmem [#allocation0], 36
    %82 = vst.msk [vmem:[%s81] sm:$0x2] %vm78, %v77
    %s83 = scalar_lea.vmem [#allocation0], 67
    %84 = vst.msk [vmem:[%s83] sm:$0x4] %vm78, %v77
    %s85 = scalar_lea.vmem [#allocation0], 98
    %86 = vst.msk [vmem:[%s85] sm:$0x8] %vm78, %v77
    %v87 = vld [vmem:[#allocation1] sm:$0xf]
    %88 = vrot.lane.b32.xlu0 %v87, 104
    %v89 = vpop.permute.xlu0 %88
    %vm90 = vcmask 31744
    %s91 = scalar_lea.vmem [#allocation0], 6
    %92 = vst.msk [vmem:[%s91] sm:$0x1] %vm90, %v89
    %s93 = scalar_lea.vmem [#allocation0], 37
    %94 = vst.msk [vmem:[%s93] sm:$0x2] %vm90, %v89
    %s95 = scalar_lea.vmem [#allocation0], 68
    %96 = vst.msk [vmem:[%s95] sm:$0x4] %vm90, %v89
    %s97 = scalar_lea.vmem [#allocation0], 99
    %98 = vst.msk [vmem:[%s97] sm:$0x8] %vm90, %v89
    %v99 = vld [vmem:[#allocation1] sm:$0xf]
    %100 = vrot.lane.b32.xlu0 %v99, 100
    %v101 = vpop.permute.xlu0 %100
    %vm102 = vcmask 31744
    %s103 = scalar_lea.vmem [#allocation0], 7
    %104 = vst.msk [vmem:[%s103] sm:$0x1] %vm102, %v101
    %s105 = scalar_lea.vmem [#allocation0], 38
    %106 = vst.msk [vmem:[%s105] sm:$0x2] %vm102, %v101
    %s107 = scalar_lea.vmem [#allocation0], 69
    %108 = vst.msk [vmem:[%s107] sm:$0x4] %vm102, %v101
    %s109 = scalar_lea.vmem [#allocation0], 100
    %110 = vst.msk [vmem:[%s109] sm:$0x8] %vm102, %v101
    %v111 = vld [vmem:[#allocation1] sm:$0xf]
    %112 = vrot.lane.b32.xlu0 %v111, 96
    %v113 = vpop.permute.xlu0 %112
    %vm114 = vcmask 31744
    %s115 = scalar_lea.vmem [#allocation0], 8
    %116 = vst.msk [vmem:[%s115] sm:$0x1] %vm114, %v113
    %s117 = scalar_lea.vmem [#allocation0], 39
    %118 = vst.msk [vmem:[%s117] sm:$0x2] %vm114, %v113
    %s119 = scalar_lea.vmem [#allocation0], 70
    %120 = vst.msk [vmem:[%s119] sm:$0x4] %vm114, %v113
    %s121 = scalar_lea.vmem [#allocation0], 101
    %122 = vst.msk [vmem:[%s121] sm:$0x8] %vm114, %v113
    %v123 = vld [vmem:[#allocation1] sm:$0xf]
    %124 = vrot.lane.b32.xlu0 %v123, 92
    %v125 = vpop.permute.xlu0 %124
    %vm126 = vcmask 31744
    %s127 = scalar_lea.vmem [#allocation0], 9
    %128 = vst.msk [vmem:[%s127] sm:$0x1] %vm126, %v125
    %s129 = scalar_lea.vmem [#allocation0], 40
    %130 = vst.msk [vmem:[%s129] sm:$0x2] %vm126, %v125
    %s131 = scalar_lea.vmem [#allocation0], 71
    %132 = vst.msk [vmem:[%s131] sm:$0x4] %vm126, %v125
    %s133 = scalar_lea.vmem [#allocation0], 102
    %134 = vst.msk [vmem:[%s133] sm:$0x8] %vm126, %v125
    %v135 = vld [vmem:[#allocation1] sm:$0xf]
    %136 = vrot.lane.b32.xlu0 %v135, 88
    %v137 = vpop.permute.xlu0 %136
    %vm138 = vcmask 31744
    %s139 = scalar_lea.vmem [#allocation0], 10
    %140 = vst.msk [vmem:[%s139] sm:$0x1] %vm138, %v137
    %s141 = scalar_lea.vmem [#allocation0], 41
    %142 = vst.msk [vmem:[%s141] sm:$0x2] %vm138, %v137
    %s143 = scalar_lea.vmem [#allocation0], 72
    %144 = vst.msk [vmem:[%s143] sm:$0x4] %vm138, %v137
    %s145 = scalar_lea.vmem [#allocation0], 103
    %146 = vst.msk [vmem:[%s145] sm:$0x8] %vm138, %v137
    %v147 = vld [vmem:[#allocation1] sm:$0xf]
    %148 = vrot.lane.b32.xlu0 %v147, 84
    %v149 = vpop.permute.xlu0 %148
    %vm150 = vcmask 31744
    %s151 = scalar_lea.vmem [#allocation0], 11
    %152 = vst.msk [vmem:[%s151] sm:$0x1] %vm150, %v149
    %s153 = scalar_lea.vmem [#allocation0], 42
    %154 = vst.msk [vmem:[%s153] sm:$0x2] %vm150, %v149
    %s155 = scalar_lea.vmem [#allocation0], 73
    %156 = vst.msk [vmem:[%s155] sm:$0x4] %vm150, %v149
    %s157 = scalar_lea.vmem [#allocation0], 104
    %158 = vst.msk [vmem:[%s157] sm:$0x8] %vm150, %v149
    %v159 = vld [vmem:[#allocation1] sm:$0xf]
    %160 = vrot.lane.b32.xlu0 %v159, 80
    %v161 = vpop.permute.xlu0 %160
    %vm162 = vcmask 31744
    %s163 = scalar_lea.vmem [#allocation0], 12
    %164 = vst.msk [vmem:[%s163] sm:$0x1] %vm162, %v161
    %s165 = scalar_lea.vmem [#allocation0], 43
    %166 = vst.msk [vmem:[%s165] sm:$0x2] %vm162, %v161
    %s167 = scalar_lea.vmem [#allocation0], 74
    %168 = vst.msk [vmem:[%s167] sm:$0x4] %vm162, %v161
    %s169 = scalar_lea.vmem [#allocation0], 105
    %170 = vst.msk [vmem:[%s169] sm:$0x8] %vm162, %v161
    %v171 = vld [vmem:[#allocation1] sm:$0xf]
    %172 = vrot.lane.b32.xlu0 %v171, 76
    %v173 = vpop.permute.xlu0 %172
    %vm174 = vcmask 31744
    %s175 = scalar_lea.vmem [#allocation0], 13
    %176 = vst.msk [vmem:[%s175] sm:$0x1] %vm174, %v173
    %s177 = scalar_lea.vmem [#allocation0], 44
    %178 = vst.msk [vmem:[%s177] sm:$0x2] %vm174, %v173
    %s179 = scalar_lea.vmem [#allocation0], 75
    %180 = vst.msk [vmem:[%s179] sm:$0x4] %vm174, %v173
    %s181 = scalar_lea.vmem [#allocation0], 106
    %182 = vst.msk [vmem:[%s181] sm:$0x8] %vm174, %v173
    %v183 = vld [vmem:[#allocation1] sm:$0xf]
    %184 = vrot.lane.b32.xlu0 %v183, 72
    %v185 = vpop.permute.xlu0 %184
    %vm186 = vcmask 31744
    %s187 = scalar_lea.vmem [#allocation0], 14
    %188 = vst.msk [vmem:[%s187] sm:$0x1] %vm186, %v185
    %s189 = scalar_lea.vmem [#allocation0], 45
    %190 = vst.msk [vmem:[%s189] sm:$0x2] %vm186, %v185
    %s191 = scalar_lea.vmem [#allocation0], 76
    %192 = vst.msk [vmem:[%s191] sm:$0x4] %vm186, %v185
    %s193 = scalar_lea.vmem [#allocation0], 107
    %194 = vst.msk [vmem:[%s193] sm:$0x8] %vm186, %v185
    %v195 = vld [vmem:[#allocation1] sm:$0xf]
    %196 = vrot.lane.b32.xlu0 %v195, 68
    %v197 = vpop.permute.xlu0 %196
    %vm198 = vcmask 31744
    %s199 = scalar_lea.vmem [#allocation0], 15
    %200 = vst.msk [vmem:[%s199] sm:$0x1] %vm198, %v197
    %s201 = scalar_lea.vmem [#allocation0], 46
    %202 = vst.msk [vmem:[%s201] sm:$0x2] %vm198, %v197
    %s203 = scalar_lea.vmem [#allocation0], 77
    %204 = vst.msk [vmem:[%s203] sm:$0x4] %vm198, %v197
    %s205 = scalar_lea.vmem [#allocation0], 108
    %206 = vst.msk [vmem:[%s205] sm:$0x8] %vm198, %v197
    %v207 = vld [vmem:[#allocation1] sm:$0xf]
    %208 = vrot.lane.b32.xlu0 %v207, 64
    %v209 = vpop.permute.xlu0 %208
    %vm210 = vcmask 31744
    %s211 = scalar_lea.vmem [#allocation0], 16
    %212 = vst.msk [vmem:[%s211] sm:$0x1] %vm210, %v209
    %s213 = scalar_lea.vmem [#allocation0], 47
    %214 = vst.msk [vmem:[%s213] sm:$0x2] %vm210, %v209
    %s215 = scalar_lea.vmem [#allocation0], 78
    %216 = vst.msk [vmem:[%s215] sm:$0x4] %vm210, %v209
    %s217 = scalar_lea.vmem [#allocation0], 109
    %218 = vst.msk [vmem:[%s217] sm:$0x8] %vm210, %v209
    %v219 = vld [vmem:[#allocation1] sm:$0xf]
    %220 = vrot.lane.b32.xlu0 %v219, 60
    %v221 = vpop.permute.xlu0 %220
    %vm222 = vcmask 31744
    %s223 = scalar_lea.vmem [#allocation0], 17
    %224 = vst.msk [vmem:[%s223] sm:$0x1] %vm222, %v221
    %s225 = scalar_lea.vmem [#allocation0], 48
    %226 = vst.msk [vmem:[%s225] sm:$0x2] %vm222, %v221
    %s227 = scalar_lea.vmem [#allocation0], 79
    %228 = vst.msk [vmem:[%s227] sm:$0x4] %vm222, %v221
    %s229 = scalar_lea.vmem [#allocation0], 110
    %230 = vst.msk [vmem:[%s229] sm:$0x8] %vm222, %v221
    %v231 = vld [vmem:[#allocation1] sm:$0xf]
    %232 = vrot.lane.b32.xlu0 %v231, 56
    %v233 = vpop.permute.xlu0 %232
    %vm234 = vcmask 31744
    %s235 = scalar_lea.vmem [#allocation0], 18
    %236 = vst.msk [vmem:[%s235] sm:$0x1] %vm234, %v233
    %s237 = scalar_lea.vmem [#allocation0], 49
    %238 = vst.msk [vmem:[%s237] sm:$0x2] %vm234, %v233
    %s239 = scalar_lea.vmem [#allocation0], 80
    %240 = vst.msk [vmem:[%s239] sm:$0x4] %vm234, %v233
    %s241 = scalar_lea.vmem [#allocation0], 111
    %242 = vst.msk [vmem:[%s241] sm:$0x8] %vm234, %v233
    %v243 = vld [vmem:[#allocation1] sm:$0xf]
    %244 = vrot.lane.b32.xlu0 %v243, 52
    %v245 = vpop.permute.xlu0 %244
    %vm246 = vcmask 31744
    %s247 = scalar_lea.vmem [#allocation0], 19
    %248 = vst.msk [vmem:[%s247] sm:$0x1] %vm246, %v245
    %s249 = scalar_lea.vmem [#allocation0], 50
    %250 = vst.msk [vmem:[%s249] sm:$0x2] %vm246, %v245
    %s251 = scalar_lea.vmem [#allocation0], 81
    %252 = vst.msk [vmem:[%s251] sm:$0x4] %vm246, %v245
    %s253 = scalar_lea.vmem [#allocation0], 112
    %254 = vst.msk [vmem:[%s253] sm:$0x8] %vm246, %v245
    %v255 = vld [vmem:[#allocation1] sm:$0xf]
    %256 = vrot.lane.b32.xlu0 %v255, 48
    %v257 = vpop.permute.xlu0 %256
    %vm258 = vcmask 31744
    %s259 = scalar_lea.vmem [#allocation0], 20
    %260 = vst.msk [vmem:[%s259] sm:$0x1] %vm258, %v257
    %s261 = scalar_lea.vmem [#allocation0], 51
    %262 = vst.msk [vmem:[%s261] sm:$0x2] %vm258, %v257
    %s263 = scalar_lea.vmem [#allocation0], 82
    %264 = vst.msk [vmem:[%s263] sm:$0x4] %vm258, %v257
    %s265 = scalar_lea.vmem [#allocation0], 113
    %266 = vst.msk [vmem:[%s265] sm:$0x8] %vm258, %v257
    %v267 = vld [vmem:[#allocation1] sm:$0xf]
    %268 = vrot.lane.b32.xlu0 %v267, 44
    %v269 = vpop.permute.xlu0 %268
    %vm270 = vcmask 31744
    %s271 = scalar_lea.vmem [#allocation0], 21
    %272 = vst.msk [vmem:[%s271] sm:$0x1] %vm270, %v269
    %s273 = scalar_lea.vmem [#allocation0], 52
    %274 = vst.msk [vmem:[%s273] sm:$0x2] %vm270, %v269
    %s275 = scalar_lea.vmem [#allocation0], 83
    %276 = vst.msk [vmem:[%s275] sm:$0x4] %vm270, %v269
    %s277 = scalar_lea.vmem [#allocation0], 114
    %278 = vst.msk [vmem:[%s277] sm:$0x8] %vm270, %v269
    %v279 = vld [vmem:[#allocation1] sm:$0xf]
    %280 = vrot.lane.b32.xlu0 %v279, 40
    %v281 = vpop.permute.xlu0 %280
    %vm282 = vcmask 31744
    %s283 = scalar_lea.vmem [#allocation0], 22
    %284 = vst.msk [vmem:[%s283] sm:$0x1] %vm282, %v281
    %s285 = scalar_lea.vmem [#allocation0], 53
    %286 = vst.msk [vmem:[%s285] sm:$0x2] %vm282, %v281
    %s287 = scalar_lea.vmem [#allocation0], 84
    %288 = vst.msk [vmem:[%s287] sm:$0x4] %vm282, %v281
    %s289 = scalar_lea.vmem [#allocation0], 115
    %290 = vst.msk [vmem:[%s289] sm:$0x8] %vm282, %v281
    %v291 = vld [vmem:[#allocation1] sm:$0xf]
    %292 = vrot.lane.b32.xlu0 %v291, 36
    %v293 = vpop.permute.xlu0 %292
    %vm294 = vcmask 31744
    %s295 = scalar_lea.vmem [#allocation0], 23
    %296 = vst.msk [vmem:[%s295] sm:$0x1] %vm294, %v293
    %s297 = scalar_lea.vmem [#allocation0], 54
    %298 = vst.msk [vmem:[%s297] sm:$0x2] %vm294, %v293
    %s299 = scalar_lea.vmem [#allocation0], 85
    %300 = vst.msk [vmem:[%s299] sm:$0x4] %vm294, %v293
    %s301 = scalar_lea.vmem [#allocation0], 116
    %302 = vst.msk [vmem:[%s301] sm:$0x8] %vm294, %v293
    %v303 = vld [vmem:[#allocation1] sm:$0xf]
    %304 = vrot.lane.b32.xlu0 %v303, 32
    %v305 = vpop.permute.xlu0 %304
    %vm306 = vcmask 31744
    %s307 = scalar_lea.vmem [#allocation0], 24
    %308 = vst.msk [vmem:[%s307] sm:$0x1] %vm306, %v305
    %s309 = scalar_lea.vmem [#allocation0], 55
    %310 = vst.msk [vmem:[%s309] sm:$0x2] %vm306, %v305
    %s311 = scalar_lea.vmem [#allocation0], 86
    %312 = vst.msk [vmem:[%s311] sm:$0x4] %vm306, %v305
    %s313 = scalar_lea.vmem [#allocation0], 117
    %314 = vst.msk [vmem:[%s313] sm:$0x8] %vm306, %v305
    %v315 = vld [vmem:[#allocation1] sm:$0xf]
    %316 = vrot.lane.b32.xlu0 %v315, 28
    %v317 = vpop.permute.xlu0 %316
    %vm318 = vcmask 31744
    %s319 = scalar_lea.vmem [#allocation0], 25
    %320 = vst.msk [vmem:[%s319] sm:$0x1] %vm318, %v317
    %s321 = scalar_lea.vmem [#allocation0], 56
    %322 = vst.msk [vmem:[%s321] sm:$0x2] %vm318, %v317
    %s323 = scalar_lea.vmem [#allocation0], 87
    %324 = vst.msk [vmem:[%s323] sm:$0x4] %vm318, %v317
    %s325 = scalar_lea.vmem [#allocation0], 118
    %326 = vst.msk [vmem:[%s325] sm:$0x8] %vm318, %v317
    %v327 = vld [vmem:[#allocation1] sm:$0xf]
    %328 = vrot.lane.b32.xlu0 %v327, 24
    %v329 = vpop.permute.xlu0 %328
    %vm330 = vcmask 31744
    %s331 = scalar_lea.vmem [#allocation0], 26
    %332 = vst.msk [vmem:[%s331] sm:$0x1] %vm330, %v329
    %s333 = scalar_lea.vmem [#allocation0], 57
    %334 = vst.msk [vmem:[%s333] sm:$0x2] %vm330, %v329
    %s335 = scalar_lea.vmem [#allocation0], 88
    %336 = vst.msk [vmem:[%s335] sm:$0x4] %vm330, %v329
    %s337 = scalar_lea.vmem [#allocation0], 119
    %338 = vst.msk [vmem:[%s337] sm:$0x8] %vm330, %v329
    %v339 = vld [vmem:[#allocation1] sm:$0xf]
    %340 = vrot.lane.b32.xlu0 %v339, 20
    %v341 = vpop.permute.xlu0 %340
    %vm342 = vcmask 31744
    %s343 = scalar_lea.vmem [#allocation0], 27
    %344 = vst.msk [vmem:[%s343] sm:$0x1] %vm342, %v341
    %s345 = scalar_lea.vmem [#allocation0], 58
    %346 = vst.msk [vmem:[%s345] sm:$0x2] %vm342, %v341
    %s347 = scalar_lea.vmem [#allocation0], 89
    %348 = vst.msk [vmem:[%s347] sm:$0x4] %vm342, %v341
    %s349 = scalar_lea.vmem [#allocation0], 120
    %350 = vst.msk [vmem:[%s349] sm:$0x8] %vm342, %v341
    %v351 = vld [vmem:[#allocation1] sm:$0xf]
    %352 = vrot.lane.b32.xlu0 %v351, 16
    %v353 = vpop.permute.xlu0 %352
    %vm354 = vcmask 31744
    %s355 = scalar_lea.vmem [#allocation0], 28
    %356 = vst.msk [vmem:[%s355] sm:$0x1] %vm354, %v353
    %s357 = scalar_lea.vmem [#allocation0], 59
    %358 = vst.msk [vmem:[%s357] sm:$0x2] %vm354, %v353
    %s359 = scalar_lea.vmem [#allocation0], 90
    %360 = vst.msk [vmem:[%s359] sm:$0x4] %vm354, %v353
    %s361 = scalar_lea.vmem [#allocation0], 121
    %362 = vst.msk [vmem:[%s361] sm:$0x8] %vm354, %v353
    %v363 = vld [vmem:[#allocation1] sm:$0xf]
    %364 = vrot.lane.b32.xlu0 %v363, 12
    %v365 = vpop.permute.xlu0 %364
    %vm366 = vcmask 31744
    %s367 = scalar_lea.vmem [#allocation0], 29
    %368 = vst.msk [vmem:[%s367] sm:$0x1] %vm366, %v365
    %s369 = scalar_lea.vmem [#allocation0], 60
    %370 = vst.msk [vmem:[%s369] sm:$0x2] %vm366, %v365
    %s371 = scalar_lea.vmem [#allocation0], 91
    %372 = vst.msk [vmem:[%s371] sm:$0x4] %vm366, %v365
    %s373 = scalar_lea.vmem [#allocation0], 122
    %374 = vst.msk [vmem:[%s373] sm:$0x8] %vm366, %v365
    %v375 = vld [vmem:[#allocation1] sm:$0xf]
    %376 = vrot.lane.b32.xlu0 %v375, 8
    %v377 = vpop.permute.xlu0 %376
    %vm378 = vcmask 31744
    %s379 = scalar_lea.vmem [#allocation0], 30
    %380 = vst.msk [vmem:[%s379] sm:$0x1] %vm378, %v377
    %s381 = scalar_lea.vmem [#allocation0], 61
    %382 = vst.msk [vmem:[%s381] sm:$0x2] %vm378, %v377
    %s383 = scalar_lea.vmem [#allocation0], 92
    %384 = vst.msk [vmem:[%s383] sm:$0x4] %vm378, %v377
    %s385 = scalar_lea.vmem [#allocation0], 123
    %386 = vst.msk [vmem:[%s385] sm:$0x8] %vm378, %v377
    %v387 = vld [vmem:[#allocation1] sm:$0xf]
    %388 = vrot.lane.b32.xlu0 %v387, 4
    %v389 = vpop.permute.xlu0 %388
    %vm390 = vcmask 31744
    %s391 = scalar_lea.vmem [#allocation0], 31
    %392 = vst.msk [vmem:[%s391] sm:$0x1] %vm390, %v389
    %s393 = scalar_lea.vmem [#allocation0], 62
    %394 = vst.msk [vmem:[%s393] sm:$0x2] %vm390, %v389
    %s395 = scalar_lea.vmem [#allocation0], 93
    %396 = vst.msk [vmem:[%s395] sm:$0x4] %vm390, %v389
    %s397 = scalar_lea.vmem [#allocation0], 124
    %398 = vst.msk [vmem:[%s397] sm:$0x8] %vm390, %v389
    %s400 = smul.u32 4, 2
    %s401 = sshllo.u32 0, %s400
    %s402 = sshrl.u32 %s400, 1
    %v403 = vld [vmem:[#allocation0] sm:%s401]
    %v404 = vpack.c.bf16 0.0, %v403
    %s405 = sshllo.u32 0, %s402
    %406 = vst [vmem:[%s1] sm:%s405] %v404
    %s407 = scalar_lea.vmem [#allocation0], 8
    %v408 = vld [vmem:[%s407] sm:%s401]
    %v409 = vpack.c.bf16 0.0, %v408
    %s410 = sshllo.u32 0, %s402
    %s411 = scalar_lea.vmem %s1, 4
    %412 = vst [vmem:[%s411] sm:%s410] %v409
    %s413 = scalar_lea.vmem [#allocation0], 16
    %v414 = vld [vmem:[%s413] sm:%s401]
    %v415 = vpack.c.bf16 0.0, %v414
    %s416 = sshllo.u32 0, %s402
    %s417 = smul.addr 4, 2
    %s418 = scalar_lea.vmem %s1, %s417
    %419 = vst [vmem:[%s418] sm:%s416] %v415
    %s420 = scalar_lea.vmem [#allocation0], 24
    %v421 = vld [vmem:[%s420] sm:%s401]
    %v422 = vpack.c.bf16 0.0, %v421
    %s423 = sshllo.u32 0, %s402
    %s424 = smul.addr 4, 3
    %s425 = scalar_lea.vmem %s1, %s424
    %426 = vst [vmem:[%s425] sm:%s423] %v422
    %s427 = scalar_lea.vmem [#allocation0], 32
    %v428 = vld [vmem:[%s427] sm:%s401]
    %v429 = vpack.c.bf16 0.0, %v428
    %s430 = sshllo.u32 0, %s402
    %s431 = smul.addr 4, 4
    %s432 = scalar_lea.vmem %s1, %s431
    %433 = vst [vmem:[%s432] sm:%s430] %v429
    %s434 = scalar_lea.vmem [#allocation0], 40
    %v435 = vld [vmem:[%s434] sm:%s401]
    %v436 = vpack.c.bf16 0.0, %v435
    %s437 = sshllo.u32 0, %s402
    %s438 = smul.addr 4, 5
    %s439 = scalar_lea.vmem %s1, %s438
    %440 = vst [vmem:[%s439] sm:%s437] %v436
    %s441 = scalar_lea.vmem [#allocation0], 48
    %v442 = vld [vmem:[%s441] sm:%s401]
    %v443 = vpack.c.bf16 0.0, %v442
    %s444 = sshllo.u32 0, %s402
    %s445 = smul.addr 4, 6
    %s446 = scalar_lea.vmem %s1, %s445
    %447 = vst [vmem:[%s446] sm:%s444] %v443
    %s448 = scalar_lea.vmem [#allocation0], 56
    %v449 = vld [vmem:[%s448] sm:%s401]
    %v450 = vpack.c.bf16 0.0, %v449
    %s451 = sshllo.u32 0, %s402
    %s452 = smul.addr 4, 7
    %s453 = scalar_lea.vmem %s1, %s452
    %454 = vst [vmem:[%s453] sm:%s451] %v450
    %s455 = scalar_lea.vmem [#allocation0], 64
    %v456 = vld [vmem:[%s455] sm:%s401]
    %v457 = vpack.c.bf16 0.0, %v456
    %s458 = sshllo.u32 0, %s402
    %s459 = smul.addr 4, 8
    %s460 = scalar_lea.vmem %s1, %s459
    %461 = vst [vmem:[%s460] sm:%s458] %v457
    %s462 = scalar_lea.vmem [#allocation0], 72
    %v463 = vld [vmem:[%s462] sm:%s401]
    %v464 = vpack.c.bf16 0.0, %v463
    %s465 = sshllo.u32 0, %s402
    %s466 = smul.addr 4, 9
    %s467 = scalar_lea.vmem %s1, %s466
    %468 = vst [vmem:[%s467] sm:%s465] %v464
    %s469 = scalar_lea.vmem [#allocation0], 80
    %v470 = vld [vmem:[%s469] sm:%s401]
    %v471 = vpack.c.bf16 0.0, %v470
    %s472 = sshllo.u32 0, %s402
    %s473 = smul.addr 4, 10
    %s474 = scalar_lea.vmem %s1, %s473
    %475 = vst [vmem:[%s474] sm:%s472] %v471
    %s476 = scalar_lea.vmem [#allocation0], 88
    %v477 = vld [vmem:[%s476] sm:%s401]
    %v478 = vpack.c.bf16 0.0, %v477
    %s479 = sshllo.u32 0, %s402
    %s480 = smul.addr 4, 11
    %s481 = scalar_lea.vmem %s1, %s480
    %482 = vst [vmem:[%s481] sm:%s479] %v478
    %s483 = scalar_lea.vmem [#allocation0], 96
    %v484 = vld [vmem:[%s483] sm:%s401]
    %v485 = vpack.c.bf16 0.0, %v484
    %s486 = sshllo.u32 0, %s402
    %s487 = smul.addr 4, 12
    %s488 = scalar_lea.vmem %s1, %s487
    %489 = vst [vmem:[%s488] sm:%s486] %v485
    %s490 = scalar_lea.vmem [#allocation0], 104
    %v491 = vld [vmem:[%s490] sm:%s401]
    %v492 = vpack.c.bf16 0.0, %v491
    %s493 = sshllo.u32 0, %s402
    %s494 = smul.addr 4, 13
    %s495 = scalar_lea.vmem %s1, %s494
    %496 = vst [vmem:[%s495] sm:%s493] %v492
    %s497 = scalar_lea.vmem [#allocation0], 112
    %v498 = vld [vmem:[%s497] sm:%s401]
    %v499 = vpack.c.bf16 0.0, %v498
    %s500 = sshllo.u32 0, %s402
    %s501 = smul.addr 4, 14
    %s502 = scalar_lea.vmem %s1, %s501
    %503 = vst [vmem:[%s502] sm:%s500] %v499
    %s504 = scalar_lea.vmem [#allocation0], 120
    %v505 = vld [vmem:[%s504] sm:%s401]
    %v506 = vpack.c.bf16 0.0, %v505
    %s507 = sshllo.u32 0, %s402
    %s508 = smul.addr 4, 15
    %s509 = scalar_lea.vmem %s1, %s508
    %510 = vst [vmem:[%s509] sm:%s507] %v506

// kernel: deepfm_forward.1
$region0: #{deepfm_forward.1}
  #allocation0 [shape = 'u32[]', space=smem, size = 0x4, offset = 0x4, fixed_abs, tag = 'smem constant byte address 0x4 - core index']
  #allocation1 [shape = 'u32[144,128]{1,0:T(1,128)}', space=vmem, size = 0x12000, scoped, tag = 'internal scratch']
  #allocation2 [shape = 'f32[1,1]{1,0:T(1,128)S(1)}', space=vmem, size = 0x200, scoped, tag = 'scoped memory for deepfm_forward.1']
  %s0 = inlined_call_operand.vmem [shape: bf16[4,128], index: 0, kind: input, shape index: {}]
  %s1 = inlined_call_operand.vmem [shape: bf16[32,128], index: 1, kind: input, shape index: {}]
  %s2 = inlined_call_operand.vmem [shape: f32[16,32], index: 2, kind: input, shape index: {}]
  %s3 = inlined_call_operand.vmem [shape: f32[16,1], index: 3, kind: input, shape index: {}]
  %s4 = inlined_call_operand.vmem [shape: f32[16,16], index: 4, kind: input, shape index: {}]
  %s5 = inlined_call_operand.vmem [shape: f32[16,1], index: 5, kind: input, shape index: {}]
  %s6 = inlined_call_operand.vmem [shape: f32[16,1], index: 6, kind: input, shape index: {}]
  %s7 = inlined_call_operand.<no memory space> [shape: f32[1,1], index: 7, kind: input, shape index: {}]
  %s8 = inlined_call_operand.vmem [shape: f32[1,1,128], index: 8, kind: output, shape index: {}]
  %s9 = sld [smem:[#allocation0]]
  $region42: #{deepfm_forward.1} parent=0
    _
  %s11 = ssub.s32 1, %s9
  %s12 = scalar_select 0, %s11, %s9
  %v13 = vstv %s7
  %14 = vst [vmem:[#allocation2] sm:$0x1] %v13
  // Predicated region
  $region2: #{deepfm_forward.1} parent=0 // pred_check
    _
  $region3: #{deepfm_forward.1} parent=0 // pred_check_branch
    %16 = sbr.rel (0) target = $region5
  $region4: #{deepfm_forward.1} parent=0 // pred_region
    _
  $region5: #{deepfm_forward.1} parent=0 // pred_fallthru
    _
  // Predicated region
  $region6: #{deepfm_forward.1} parent=0 // pred_check
    _
  $region7: #{deepfm_forward.1} parent=0 // pred_check_branch
    %18 = sbr.rel (0) target = $region9
  $region8: #{deepfm_forward.1} parent=0 // pred_region
    _
  $region9: #{deepfm_forward.1} parent=0 // pred_fallthru
    _
  // Predicated region
  $region10: #{deepfm_forward.1} parent=0 // pred_check
    _
  $region11: #{deepfm_forward.1} parent=0 // pred_check_branch
    %20 = sbr.rel (0) target = $region13
  $region12: #{deepfm_forward.1} parent=0 // pred_region
    _
  $region13: #{deepfm_forward.1} parent=0 // pred_fallthru
    _
  // Predicated region
  $region14: #{deepfm_forward.1} parent=0 // pred_check
    _
  $region15: #{deepfm_forward.1} parent=0 // pred_check_branch
    %22 = sbr.rel (0) target = $region17
  $region16: #{deepfm_forward.1} parent=0 // pred_region
    _
  $region17: #{deepfm_forward.1} parent=0 // pred_fallthru
    _
  // Predicated region
  $region18: #{deepfm_forward.1} parent=0 // pred_check
    _
  $region19: #{deepfm_forward.1} parent=0 // pred_check_branch
    %24 = sbr.rel (0) target = $region21
  $region20: #{deepfm_forward.1} parent=0 // pred_region
    _
  $region21: #{deepfm_forward.1} parent=0 // pred_fallthru
    _
  // Predicated region
  $region22: #{deepfm_forward.1} parent=0 // pred_check
    _
  $region23: #{deepfm_forward.1} parent=0 // pred_check_branch
    %26 = sbr.rel (0) target = $region25
  $region24: #{deepfm_forward.1} parent=0 // pred_region
    _
  $region25: #{deepfm_forward.1} parent=0 // pred_fallthru
    _
  // Predicated region
  $region26: #{deepfm_forward.1} parent=0 // pred_check
    _
  $region27: #{deepfm_forward.1} parent=0 // pred_check_branch
    %28 = sbr.rel (0) target = $region29
  $region28: #{deepfm_forward.1} parent=0 // pred_region
    _
  $region29: #{deepfm_forward.1} parent=0 // pred_fallthru
    _
  // Predicated region
  $region30: #{deepfm_forward.1} parent=0 // pred_check
    _
  $region31: #{deepfm_forward.1} parent=0 // pred_check_branch
    %30 = sbr.rel (0) target = $region33
  $region32: #{deepfm_forward.1} parent=0 // pred_region
    _
  $region33: #{deepfm_forward.1} parent=0 // pred_fallthru
    _
  %v31 = vld [vmem:[%s1] sm:$0xf]
  %v32 = vld [vmem:[%s1 + $0x4] sm:$0xf]
  %v33 = vld [vmem:[%s1 + $0x8] sm:$0xf]
  %v34 = vld [vmem:[%s1 + $0xc] sm:$0xf]
  %v35 = vunpack.c.l.bf16 %v31
  %v36 = vunpack.c.l.bf16 %v32
  %v37 = vunpack.c.l.bf16 %v33
  %v38 = vunpack.c.l.bf16 %v34
  %v39 = vld [vmem:[%s0] sm:$0x3]
  %v40 = vunpack.c.l.bf16 %v39
  %vm41 = vcmask 1043456
  %v42 = vsel %vm41, %v40, 0.0
  %v43 = vrot.slane %v42, 4
  %v44 = vadd.f32 %v42, %v43
  %v45 = vrot.slane %v44, 2
  %v46 = vadd.f32 %v44, %v45
  %v47 = vrot.slane %v46, 1
  %v48 = vadd.f32 %v46, %v47
  %v49 = vadd.f32 %v35, %v36
  %v50 = vadd.f32 %v49, %v37
  %v51 = vadd.f32 %v50, %v38
  %v52 = vmul.f32 %v51, %v51
  %v53 = vrot.slane %v52, 4
  %v54 = vadd.f32 %v52, %v53
  %v55 = vrot.slane %v54, 2
  %v56 = vadd.f32 %v54, %v55
  %v57 = vrot.slane %v56, 1
  %v58 = vadd.f32 %v56, %v57
  %v59 = vmul.f32 %v35, %v35
  %v60 = vmul.f32 %v36, %v36
  %v61 = vmul.f32 %v37, %v37
  %v62 = vmul.f32 %v38, %v38
  %v63 = vadd.f32 %v59, %v60
  %v64 = vadd.f32 %v63, %v61
  %v65 = vadd.f32 %v64, %v62
  %v66 = vrot.slane %v65, 4
  %v67 = vadd.f32 %v65, %v66
  %v68 = vrot.slane %v67, 2
  %v69 = vadd.f32 %v67, %v68
  %v70 = vrot.slane %v69, 1
  %v71 = vadd.f32 %v69, %v70
  %v72 = vsub.f32 %v58, %v71
  %v73 = vmul.f32 %v72, 0.5
  %v74 = vld [vmem:[%s2] sm:$0xff]
  %v75 = vld [vmem:[%s2 + $0x8] sm:$0xff]
  %v76 = vld [vmem:[%s3] sm:$0xff]
  %v77 = vld [vmem:[%s3 + $0x8] sm:$0xff]
  %79 = vset.pattern.permute.xlu0 0
  %80 = vperm.xlu0 %79, %v76
  %v81 = vpop.permute.xlu0 %80
  %84 = vset.pattern.permute.xlu0 0
  %85 = vperm.xlu0 %84, %v77
  %v86 = vpop.permute.xlu0 %85
  %vm88 = vcmask 261120
  %v90 = vsel %vm88, %v74, 0
  %v93 = vsel %vm88, %v75, 0
  %95 = vmatprep.subr.mxu0 0.0
  %96 = vmatpush1.msra.mxu0 %v35
  %97 = vmatprep.subr.mxu0 0.0
  %98 = vmatpush1.msra.mxu0 %v36
  %99 = vmatprep.subr.mxu0 0.0
  %100 = vmatpush1.msra.mxu0 %v37
  %101 = vmatprep.subr.mxu0 0.0
  %102 = vmatpush1.msra.mxu0 %v38
  %103 = vmatprep.subr.mxu0 0.0
  %104 = vmatpush1.msra.mxu0 0.0
  %105 = vmatprep.subr.mxu0 0.0
  %106 = vmatpush1.msra.mxu0 0.0
  %107 = vmatprep.subr.mxu0 0.0
  %108 = vmatpush1.msra.mxu0 0.0
  %109 = vmatprep.subr.mxu0 0.0
  %110 = vmatpush1.msra.mxu0 0.0
  %111 = vmatprep.subr.mxu0 0.0
  %112 = vmatpush1.msra.mxu0 0.0
  %113 = vmatprep.subr.mxu0 0.0
  %114 = vmatpush1.msra.mxu0 0.0
  %115 = vmatprep.subr.mxu0 0.0
  %116 = vmatpush1.msra.mxu0 0.0
  %117 = vmatprep.subr.mxu0 0.0
  %118 = vmatpush1.msra.mxu0 0.0
  %119 = vmatprep.subr.mxu0 0.0
  %120 = vmatpush1.msra.mxu0 0.0
  %121 = vmatprep.subr.mxu0 0.0
  %122 = vmatpush1.msra.mxu0 0.0
  %123 = vmatprep.subr.mxu0 0.0
  %124 = vmatpush1.msra.mxu0 0.0
  %125 = vmatprep.subr.mxu0 0.0
  %126 = vmatpush1.msra.mxu0 0.0
  %127 = vmatprep.subr.mxu0 0.0
  %128 = vmatpush1.msra.mxu0 0.0
  %129 = vmatprep.subr.mxu0 0.0
  %130 = vmatpush1.msra.mxu0 0.0
  %131 = vmatprep.subr.mxu0 0.0
  %132 = vmatpush1.msra.mxu0 0.0
  %133 = vmatprep.subr.mxu0 0.0
  %134 = vmatpush1.msra.mxu0 0.0
  %135 = vmatprep.subr.mxu0 0.0
  %136 = vmatpush1.msra.mxu0 0.0
  %137 = vmatprep.subr.mxu0 0.0
  %138 = vmatpush1.msra.mxu0 0.0
  %139 = vmatprep.subr.mxu0 0.0
  %140 = vmatpush1.msra.mxu0 0.0
  %141 = vmatprep.subr.mxu0 0.0
  %142 = vmatpush1.msra.mxu0 0.0
  %143 = vmatprep.subr.mxu0 0.0
  %144 = vmatpush1.msra.mxu0 0.0
  %145 = vmatprep.subr.mxu0 0.0
  %146 = vmatpush1.msra.mxu0 0.0
  %147 = vmatprep.subr.mxu0 0.0
  %148 = vmatpush1.msra.mxu0 0.0
  %149 = vmatprep.subr.mxu0 0.0
  %150 = vmatpush1.msra.mxu0 0.0
  %151 = vmatprep.subr.mxu0 0.0
  %152 = vmatpush1.msra.mxu0 0.0
  %153 = vmatprep.subr.mxu0 0.0
  %154 = vmatpush1.msra.mxu0 0.0
  %155 = vmatprep.subr.mxu0 0.0
  %156 = vmatpush1.msra.mxu0 0.0
  %157 = vmatprep.subr.mxu0 0.0
  %158 = vmatpush1.msra.mxu0 0.0
  %159 = vmatprep.mubr.f32.mxu0 0.0
  %160 = vmatmul.mubr.f32.gmra.mrb[0].mxu0 %v90
  %v161 = vpop.f32.mrb[0].mxu0
  %v162 = vadd.f32 %v81, %v161
  %v163 = vpop.f32.mrb[0].mxu0
  %164 = vmatprep.mubr.f32.mxu0 0.0
  %165 = vmatmul.mubr.f32.gmra.mrb[0].mxu0 %v93
  %v166 = vpop.f32.mrb[0].mxu0
  %v167 = vadd.f32 %v86, %v166
  %v168 = vpop.f32.mrb[0].mxu0
  %169 = vdwg.mxu0
  %v170 = vmax.f32 %v162, 0.0
  %v171 = vmax.f32 %v167, 0.0
  %v172 = vld [vmem:[%s4] sm:$0xff]
  %v173 = vld [vmem:[%s4 + $0x8] sm:$0xff]
  %v174 = vld [vmem:[%s5] sm:$0xff]
  %v175 = vld [vmem:[%s5 + $0x8] sm:$0xff]
  %177 = vset.pattern.permute.xlu0 0
  %178 = vperm.xlu0 %177, %v174
  %v179 = vpop.permute.xlu0 %178
  %182 = vset.pattern.permute.xlu0 0
  %183 = vperm.xlu0 %182, %v175
  %v184 = vpop.permute.xlu0 %183
  %vm186 = vcmask 130048
  %v188 = vsel %vm186, %v172, 0
  %v191 = vsel %vm186, %v173, 0
  %193 = vmatprep.subr.mxu0 0.0
  %194 = vmatpush1.msra.mxu0 %v170
  %195 = vmatprep.subr.mxu0 0.0
  %196 = vmatpush1.msra.mxu0 %v171
  %197 = vmatprep.subr.mxu0 0.0
  %198 = vmatpush1.msra.mxu0 0.0
  %199 = vmatprep.subr.mxu0 0.0
  %200 = vmatpush1.msra.mxu0 0.0
  %201 = vmatprep.subr.mxu0 0.0
  %202 = vmatpush1.msra.mxu0 0.0
  %203 = vmatprep.subr.mxu0 0.0
  %204 = vmatpush1.msra.mxu0 0.0
  %205 = vmatprep.subr.mxu0 0.0
  %206 = vmatpush1.msra.mxu0 0.0
  %207 = vmatprep.subr.mxu0 0.0
  %208 = vmatpush1.msra.mxu0 0.0
  %209 = vmatprep.subr.mxu0 0.0
  %210 = vmatpush1.msra.mxu0 0.0
  %211 = vmatprep.subr.mxu0 0.0
  %212 = vmatpush1.msra.mxu0 0.0
  %213 = vmatprep.subr.mxu0 0.0
  %214 = vmatpush1.msra.mxu0 0.0
  %215 = vmatprep.subr.mxu0 0.0
  %216 = vmatpush1.msra.mxu0 0.0
  %217 = vmatprep.subr.mxu0 0.0
  %218 = vmatpush1.msra.mxu0 0.0
  %219 = vmatprep.subr.mxu0 0.0
  %220 = vmatpush1.msra.mxu0 0.0
  %221 = vmatprep.subr.mxu0 0.0
  %222 = vmatpush1.msra.mxu0 0.0
  %223 = vmatprep.subr.mxu0 0.0
  %224 = vmatpush1.msra.mxu0 0.0
  %225 = vmatprep.subr.mxu0 0.0
  %226 = vmatpush1.msra.mxu0 0.0
  %227 = vmatprep.subr.mxu0 0.0
  %228 = vmatpush1.msra.mxu0 0.0
  %229 = vmatprep.subr.mxu0 0.0
  %230 = vmatpush1.msra.mxu0 0.0
  %231 = vmatprep.subr.mxu0 0.0
  %232 = vmatpush1.msra.mxu0 0.0
  %233 = vmatprep.subr.mxu0 0.0
  %234 = vmatpush1.msra.mxu0 0.0
  %235 = vmatprep.subr.mxu0 0.0
  %236 = vmatpush1.msra.mxu0 0.0
  %237 = vmatprep.subr.mxu0 0.0
  %238 = vmatpush1.msra.mxu0 0.0
  %239 = vmatprep.subr.mxu0 0.0
  %240 = vmatpush1.msra.mxu0 0.0
  %241 = vmatprep.subr.mxu0 0.0
  %242 = vmatpush1.msra.mxu0 0.0
  %243 = vmatprep.subr.mxu0 0.0
  %244 = vmatpush1.msra.mxu0 0.0
  %245 = vmatprep.subr.mxu0 0.0
  %246 = vmatpush1.msra.mxu0 0.0
  %247 = vmatprep.subr.mxu0 0.0
  %248 = vmatpush1.msra.mxu0 0.0
  %249 = vmatprep.subr.mxu0 0.0
  %250 = vmatpush1.msra.mxu0 0.0
  %251 = vmatprep.subr.mxu0 0.0
  %252 = vmatpush1.msra.mxu0 0.0
  %253 = vmatprep.subr.mxu0 0.0
  %254 = vmatpush1.msra.mxu0 0.0
  %255 = vmatprep.subr.mxu0 0.0
  %256 = vmatpush1.msra.mxu0 0.0
  %257 = vmatprep.mubr.f32.mxu0 0.0
  %258 = vmatmul.mubr.f32.gmra.mrb[0].mxu0 %v188
  %v259 = vpop.f32.mrb[0].mxu0
  %v260 = vadd.f32 %v179, %v259
  %v261 = vpop.f32.mrb[0].mxu0
  %262 = vmatprep.mubr.f32.mxu0 0.0
  %263 = vmatmul.mubr.f32.gmra.mrb[0].mxu0 %v191
  %v264 = vpop.f32.mrb[0].mxu0
  %v265 = vadd.f32 %v184, %v264
  %v266 = vpop.f32.mrb[0].mxu0
  %267 = vdwg.mxu0
  %v268 = vmax.f32 %v260, 0.0
  %v269 = vmax.f32 %v265, 0.0
  %v270 = vld [vmem:[%s6] sm:$0xff]
  %v271 = vld [vmem:[%s6 + $0x8] sm:$0xff]
  %273 = vset.pattern.permute.xlu0 0
  %274 = vperm.xlu0 %273, %v270
  %v275 = vpop.permute.xlu0 %274
  %278 = vset.pattern.permute.xlu0 0
  %279 = vperm.xlu0 %278, %v271
  %v280 = vpop.permute.xlu0 %279
  %v282 = vmul.f32 %v268, %v275
  %v283 = vmul.f32 %v269, %v280
  %v284 = vadd.f32 %v282, %v283
  %v285 = vrot.slane %v284, 4
  %v286 = vadd.f32 %v284, %v285
  %v287 = vrot.slane %v286, 2
  %v288 = vadd.f32 %v286, %v287
  %v289 = vrot.slane %v288, 1
  %v290 = vadd.f32 %v288, %v289
  %v291 = vadd.f32 %v48, %v73
  %v292 = vadd.f32 %v291, %v290
  %v293 = vld [vmem:[#allocation2] sm:$0x1]
  %295 = vset.pattern.permute.xlu0 0
  %296 = vperm.xlu0 %295, %v293
  %v297 = vpop.permute.xlu0 %296
  %v299 = vlaneseq
  %v300 = vshrl.u32 %v299, 7
  %v301 = vsub.s32 0, %v300
  %v302 = vrot.slane %v297, %v301
  %v303 = vadd.f32 %v292, %v302
  %304 = vst [vmem:[%s8] sm:$0x1] %v303
  // Predicated region
  $region34: #{deepfm_forward.1} parent=0 // pred_check
    _
  $region35: #{deepfm_forward.1} parent=0 // pred_check_branch
    %306 = sbr.rel (0) target = $region37
  $region36: #{deepfm_forward.1} parent=0 // pred_region
    _
  $region37: #{deepfm_forward.1} parent=0 // pred_fallthru
    _
  // Predicated region
  $region38: #{deepfm_forward.1} parent=0 // pred_check
    _
  $region39: #{deepfm_forward.1} parent=0 // pred_check_branch
    %308 = sbr.rel (0) target = $region41
  $region40: #{deepfm_forward.1} parent=0 // pred_region
    _
  $region41: #{deepfm_forward.1} parent=0 // pred_fallthru
    _

</llo_original>
